<compile_context>
chip_gen: v6e
topology: v6e:2x2x1
jax: 0.10.0
libtpu: 0.0.40
codegen_flags: <defaults>
</compile_context>

<pallas_src>
import functools

import jax
import jax.numpy as jnp
from jax.experimental import pallas as pl
from jax.experimental.pallas import tpu as pltpu

_BN_EPS = 1e-5
_LANE = 128
_SUBLANE = 8
# Per-step VMEM budget used to pick the weight-tile width. 40 MiB (+25% headroom
# added below) stays under v7x's 64 MiB physical VMEM and well under v5e/v6e's
# 128 MiB; the scoped limit is raised explicitly via CompilerParams.
_VMEM_TILE_BUDGET = 40 * 1024 * 1024


def project_head_kernel(x_ref, w1_ref, gamma_ref, beta_ref, w2_ref, b2_ref,
                        o_ref, acc_ref, *, batch, batch_padded):
    """One feature tile: layer1 column tile -> BN(tile) -> layer2 row tile."""
    j = pl.program_id(0)

    @pl.when(j == 0)
    def _():
        acc_ref[...] = jnp.zeros_like(acc_ref)

    # layer1 column tile on the MXU, f32 accumulation; operands stay in their
    # native (possibly bf16) dtype.  The layer1 bias is intentionally omitted:
    # BatchNorm's batch-mean subtraction cancels it exactly.
    x = x_ref[...]                                                    # [Bp, Hp]
    h = jnp.dot(x, w1_ref[...], preferred_element_type=jnp.float32)   # [Bp, tn] f32

    # BatchNorm1d (training) stats for this tile's features, in f32.
    # Two-pass (centered) variance -> no catastrophic cancellation.
    # Padded batch rows of x are all-zero (and b1 is dropped) so their h rows
    # are exactly zero: the sum/batch gives the true mean, and padded rows are
    # masked out of the variance.
    inv_b = 1.0 / batch
    mean = jnp.sum(h, axis=0, keepdims=True) * inv_b                  # [1, tn]
    centered = h - mean
    if batch_padded != batch:   # static branch: mask only when padding exists
        row = jax.lax.broadcasted_iota(jnp.int32, h.shape, 0)
        centered = jnp.where(row < batch, centered, 0.0)
    var = jnp.sum(centered * centered, axis=0, keepdims=True) * inv_b  # biased

    # Fused affine: 2 VPU ops on the [Bp, tn] tile.  Padded feature columns
    # have gamma == 0 -> scale == 0, so rsqrt(eps) never produces NaNs.
    scale = gamma_ref[...] * jax.lax.rsqrt(var + _BN_EPS)             # [1, tn]
    shift = beta_ref[...] - mean * scale                              # [1, tn]
    h_norm = h * scale + shift                                        # [Bp, tn]

    # layer2 partial product, accumulated over feature tiles in f32 VMEM.
    # h_norm is cast back to the weight dtype so bf16 weights keep the
    # bf16-native MXU path; the accumulation itself stays f32.
    acc_ref[...] += jnp.dot(h_norm.astype(w2_ref.dtype), w2_ref[...],
                            preferred_element_type=jnp.float32)

    @pl.when(j == pl.num_programs(0) - 1)
    def _():
        o_ref[...] = (acc_ref[...] + b2_ref[...]).astype(o_ref.dtype)


def _round_up(n, m):
    return pl.cdiv(n, m) * m


def _pad2(a, rows, cols):
    return jnp.pad(a, ((0, rows - a.shape[0]), (0, cols - a.shape[1])))


def _pad_row(v, cols):
    return jnp.pad(v, (0, cols - v.shape[0])).reshape(1, cols).astype(jnp.float32)


def _vmem_bytes(bp, hp, tn, w_size, out_size):
    x_b = 2 * bp * hp * w_size            # x block (double-buffered)
    w1_b = 2 * hp * tn * w_size           # W1 column tile x 2 buffers
    w2_b = 2 * tn * hp * w_size           # W2 row tile x 2 buffers
    vec_b = 2 * (2 * tn + hp) * 4         # gamma/beta tiles + b2 row
    out_b = 2 * bp * hp * out_size        # output block
    acc_b = bp * hp * 4                   # f32 accumulator scratch
    return x_b + w1_b + w2_b + vec_b + out_b + acc_b


def _pick_tile(bp, hp, w_size, out_size, budget=_VMEM_TILE_BUDGET):
    # Largest lane-dense tile (review: >=512 lanes preferred) fitting the budget.
    cands = sorted({t for t in (hp, 1024, 512, 256, 128)
                    if t <= hp and hp % t == 0}, reverse=True)
    for tn in cands:
        need = _vmem_bytes(bp, hp, tn, w_size, out_size)
        if need <= budget:
            return tn, need
    tn = cands[-1]
    return tn, _vmem_bytes(bp, hp, tn, w_size, out_size)


def init_project_head_params(w1, b1, gamma, beta, w2, b2, compute_dtype=None):
    """Pad/cast ProjectHead parameters ONCE (hoisted out of the per-call path).

    w1, w2 are [H_in, H_out] (i.e. nn.Linear.weight transposed).  b1 is accepted
    for interface parity but unused: BatchNorm's batch-mean subtraction cancels
    it exactly.  Pass compute_dtype=jnp.bfloat16 to halve weight-HBM traffic and
    hit the bf16-native MXU on v6e/v7x (BN stats / accumulation stay f32).
    """
    del b1
    H = w1.shape[0]
    assert w1.shape == (H, H) and w2.shape == (H, H)
    if compute_dtype is None:
        compute_dtype = w1.dtype
    Hp = _round_up(H, _LANE)
    return dict(
        n_h=H,
        w1=_pad2(w1, Hp, Hp).astype(compute_dtype),
        w2=_pad2(w2, Hp, Hp).astype(compute_dtype),
        gamma=_pad_row(gamma, Hp),   # padded features get gamma=0 -> scale=0
        beta=_pad_row(beta, Hp),
        b2=_pad_row(b2, Hp),
    )


def project_head(x, params):
    """Forward pass: Linear -> BatchNorm1d(training) -> Linear.  x: [B, n_h]."""
    B, H = x.shape
    assert H == params["n_h"]
    w1, w2 = params["w1"], params["w2"]
    Hp = w1.shape[0]
    Bp = _round_up(B, _SUBLANE)
    compute_dtype = w1.dtype
    out_dtype = x.dtype

    # Only the cheap, activation-sized x pad stays in the per-call path.
    xp = _pad2(x, Bp, Hp).astype(compute_dtype)

    w_size = w1.dtype.itemsize
    out_size = x.dtype.itemsize
    tn, vmem_need = _pick_tile(Bp, Hp, w_size, out_size)
    num_tiles = Hp // tn
    vmem_limit = min(int(vmem_need * 1.25) + (2 << 20), 128 * 1024 * 1024)

    # batch/batch_padded are baked in statically (a change in B recompiles
    # anyway because the operand shapes change).
    kernel = functools.partial(project_head_kernel, batch=B, batch_padded=Bp)

    grid_spec = pltpu.PrefetchScalarGridSpec(
        num_scalar_prefetch=0,
        grid=(num_tiles,),
        in_specs=[
            pl.BlockSpec((Bp, Hp), lambda j: (0, 0)),               # x (resident)
            pl.BlockSpec((Hp, tn), lambda j: (0, j),                # W1 column tiles
                         pipeline_mode=pl.Buffered(2)),
            pl.BlockSpec((1, tn), lambda j: (0, j)),                # gamma tile
            pl.BlockSpec((1, tn), lambda j: (0, j)),                # beta tile
            pl.BlockSpec((tn, Hp), lambda j: (j, 0),                # W2 row tiles
                         pipeline_mode=pl.Buffered(2)),
            pl.BlockSpec((1, Hp), lambda j: (0, 0)),                # b2 (resident)
        ],
        out_specs=pl.BlockSpec((Bp, Hp), lambda j: (0, 0)),         # y (resident)
        scratch_shapes=[pltpu.VMEM((Bp, Hp), jnp.float32)],         # f32 y accumulator
    )

    cost = pl.CostEstimate(
        flops=4 * Bp * Hp * Hp,                                     # two matmuls
        transcendentals=Hp,                                         # rsqrt per feature
        bytes_accessed=2 * Hp * Hp * w_size + Bp * Hp * (w_size + out_size)
                       + 3 * Hp * 4,
    )

    # TODO(synk): on v7x (2 TensorCores) a further DMA-issue win is possible by
    # splitting the layer-2 output columns across cores (parallel leading axis)
    # at the cost of reading W1 twice; the single 'arbitrary' axis below already
    # streams weights double-buffered, which is the dominant term on 1-TC chips.
    # TODO(synk): for very large B, also tile the batch axis (x/acc/out blocks).
    out = pl.pallas_call(
        kernel,
        out_shape=jax.ShapeDtypeStruct((Bp, Hp), out_dtype),
        grid_spec=grid_spec,
        compiler_params=pltpu.CompilerParams(
            dimension_semantics=("arbitrary",),       # y accumulates across tiles
            vmem_limit_bytes=vmem_limit),
        cost_estimate=cost,
    )(xp, params["w1"], params["gamma"], params["beta"], params["w2"], params["b2"])

    if Bp == B and Hp == H:
        return out
    return out[:B, :H]


def project_head_ref(x, w1, b1, gamma, beta, w2, b2):
    """Pure-JAX reference (mirrors PyTorch ProjectHead.forward in training mode)."""
    h = x @ w1 + b1
    mean = jnp.mean(h, axis=0, keepdims=True)
    var = jnp.mean((h - mean) ** 2, axis=0, keepdims=True)
    h = (h - mean) / jnp.sqrt(var + _BN_EPS) * gamma + beta
    return h @ w2 + b2


if __name__ == "__main__":
    key = jax.random.PRNGKey(0)
    B, H = 8, 32  # batch=8, n_h=32

    k_x, k_w1, k_b1, k_g, k_be, k_w2, k_b2 = jax.random.split(key, 7)

    # Deterministic synthetic parameters (uniform in [-1/sqrt(H), 1/sqrt(H)],
    # matching nn.Linear's default init range; BN gamma/beta nontrivial).
    bound = 1.0 / jnp.sqrt(jnp.float32(H))
    x = jax.random.normal(k_x, (B, H), dtype=jnp.float32)
    w1 = jax.random.uniform(k_w1, (H, H), jnp.float32, -bound, bound)   # [in, out]
    b1 = jax.random.uniform(k_b1, (H,), jnp.float32, -bound, bound)
    gamma = 1.0 + 0.1 * jax.random.normal(k_g, (H,), dtype=jnp.float32)
    beta = 0.1 * jax.random.normal(k_be, (H,), dtype=jnp.float32)
    w2 = jax.random.uniform(k_w2, (H, H), jnp.float32, -bound, bound)   # [in, out]
    b2 = jax.random.uniform(k_b2, (H,), jnp.float32, -bound, bound)

    ref = project_head_ref(x, w1, b1, gamma, beta, w2, b2)

    # f32 path: exact check against the PyTorch-style reference.
    params = init_project_head_params(w1, b1, gamma, beta, w2, b2)
    out = jax.block_until_ready(project_head(x, params))
    assert out.shape == (B, H)
    assert jnp.allclose(out, ref, atol=1e-4, rtol=1e-4), "f32 mismatch vs reference"

    # bf16 weight-streaming path (halves HBM weight traffic; bf16-native MXU on
    # v6e/v7x).  BN stats and matmul accumulation stay f32; loose tolerance
    # because operands are truncated to bf16 (documented mixed-precision drift).
    params_bf16 = init_project_head_params(w1, b1, gamma, beta, w2, b2,
                                           compute_dtype=jnp.bfloat16)
    out_bf16 = jax.block_until_ready(project_head(x.astype(jnp.bfloat16),
                                                  params_bf16))
    assert out_bf16.shape == (B, H)
    out_bf16_f32 = out_bf16.astype(jnp.float32)
    assert bool(jnp.all(jnp.isfinite(out_bf16_f32)))
    assert jnp.allclose(out_bf16_f32, ref, atol=0.3, rtol=0.1), "bf16 drift too large"

    print("KERNEL_OK")
</pallas_src>

<mosaic_0001>
module attributes {stable_mosaic.version = 11 : i64} {
  func.func @project_head_kernel(%arg0: i32, %arg1: memref<8x128xf32, #tpu.memory_space<vmem>>, %arg2: memref<128x128xf32, #tpu.memory_space<vmem>>, %arg3: memref<1x128xf32, #tpu.memory_space<vmem>>, %arg4: memref<1x128xf32, #tpu.memory_space<vmem>>, %arg5: memref<128x128xf32, #tpu.memory_space<vmem>>, %arg6: memref<1x128xf32, #tpu.memory_space<vmem>>, %arg7: memref<8x128xf32, #tpu.memory_space<vmem>>, %arg8: memref<8x128xf32, #tpu.memory_space<vmem>>) attributes {dimension_semantics = [#tpu.dimension_semantics<arbitrary>], iteration_bounds = array<i64: 1>, scalar_prefetch = 0 : i64, scratch_operands = 1 : i64, tpu.core_type = #tpu.core_type<tc>, window_params = [{pipeline_mode = #tpu.pipeline_mode<synchronous>, transform_indices = @transform_0, window_bounds = array<i64: 8, 128>}, {pipeline_mode = #tpu.pipeline_mode<double_buffered>, transform_indices = @transform_1, window_bounds = array<i64: 128, 128>}, {transform_indices = @transform_2, window_bounds = array<i64: 1, 128>}, {transform_indices = @transform_3, window_bounds = array<i64: 1, 128>}, {pipeline_mode = #tpu.pipeline_mode<double_buffered>, transform_indices = @transform_4, window_bounds = array<i64: 128, 128>}, {pipeline_mode = #tpu.pipeline_mode<synchronous>, transform_indices = @transform_5, window_bounds = array<i64: 1, 128>}, {pipeline_mode = #tpu.pipeline_mode<synchronous>, transform_indices = @transform_6, window_bounds = array<i64: 8, 128>}]} {
    %c0_i32 = arith.constant 0 : i32
    %0 = arith.cmpi eq, %arg0, %c0_i32 : i32
    %1 = arith.extui %0 : i1 to i32
    %c0_i32_0 = arith.constant 0 : i32
    %2 = arith.cmpi ne, %1, %c0_i32_0 : i32
    scf.if %2 {
      %cst_22 = arith.constant 0.000000e+00 : f32
      %37 = vector.broadcast %cst_22 : f32 to vector<8x128xf32>
      %c0_23 = arith.constant 0 : index
      %c0_24 = arith.constant 0 : index
      %38 = vector.load %arg8[%c0_23, %c0_24] : memref<8x128xf32, #tpu.memory_space<vmem>>, vector<8x128xf32>
      tpu.vector_store %arg8[%c0_23, %c0_24], %37 {strides = array<i32>} : memref<8x128xf32, #tpu.memory_space<vmem>>, vector<8x128xf32>,
    } else {
    }
    %c0 = arith.constant 0 : index
    %c0_1 = arith.constant 0 : index
    %3 = vector.load %arg1[%c0, %c0_1] : memref<8x128xf32, #tpu.memory_space<vmem>>, vector<8x128xf32>
    %c0_2 = arith.constant 0 : index
    %c0_3 = arith.constant 0 : index
    %4 = vector.load %arg2[%c0_2, %c0_3] : memref<128x128xf32, #tpu.memory_space<vmem>>, vector<128x128xf32>
    %cst = arith.constant dense<0.000000e+00> : vector<8x128xf32>
    %5 = tpu.matmul %3, %4, %cst {dimension_numbers = #tpu.dot_dimension_numbers<[1], [0], [0], [1], [0, 0, 1, 1], [], []>} : vector<8x128xf32>, vector<128x128xf32>, vector<8x128xf32> -> vector<8x128xf32>
    %cst_4 = arith.constant dense<0.000000e+00> : vector<128xf32>
    %6 = vector.multi_reduction <add>, %5, %cst_4 [0] : vector<8x128xf32> to vector<128xf32>
    %7 = vector.shape_cast %6 : vector<128xf32> to vector<1x128xf32>
    %cst_5 = arith.constant 1.250000e-01 : f32
    %8 = vector.broadcast %cst_5 : f32 to vector<1x128xf32>
    %9 = arith.mulf %7, %8 : vector<1x128xf32>
    %10 = vector.broadcast %9 : vector<1x128xf32> to vector<8x128xf32>
    %11 = arith.subf %5, %10 : vector<8x128xf32>
    %12 = arith.mulf %11, %11 : vector<8x128xf32>
    %cst_6 = arith.constant dense<0.000000e+00> : vector<128xf32>
    %13 = vector.multi_reduction <add>, %12, %cst_6 [0] : vector<8x128xf32> to vector<128xf32>
    %14 = vector.shape_cast %13 : vector<128xf32> to vector<1x128xf32>
    %cst_7 = arith.constant 1.250000e-01 : f32
    %15 = vector.broadcast %cst_7 : f32 to vector<1x128xf32>
    %16 = arith.mulf %14, %15 : vector<1x128xf32>
    %c0_8 = arith.constant 0 : index
    %c0_9 = arith.constant 0 : index
    %17 = vector.load %arg3[%c0_8, %c0_9] : memref<1x128xf32, #tpu.memory_space<vmem>>, vector<1x128xf32>
    %cst_10 = arith.constant 9.99999974E-6 : f32
    %18 = vector.broadcast %cst_10 : f32 to vector<1x128xf32>
    %19 = arith.addf %16, %18 : vector<1x128xf32>
    %20 = math.rsqrt %19 : vector<1x128xf32>
    %21 = arith.mulf %17, %20 : vector<1x128xf32>
    %c0_11 = arith.constant 0 : index
    %c0_12 = arith.constant 0 : index
    %22 = vector.load %arg4[%c0_11, %c0_12] : memref<1x128xf32, #tpu.memory_space<vmem>>, vector<1x128xf32>
    %23 = arith.mulf %9, %21 : vector<1x128xf32>
    %24 = arith.subf %22, %23 : vector<1x128xf32>
    %25 = vector.broadcast %21 : vector<1x128xf32> to vector<8x128xf32>
    %26 = arith.mulf %5, %25 : vector<8x128xf32>
    %27 = vector.broadcast %24 : vector<1x128xf32> to vector<8x128xf32>
    %28 = arith.addf %26, %27 : vector<8x128xf32>
    %c0_13 = arith.constant 0 : index
    %c0_14 = arith.constant 0 : index
    %29 = vector.load %arg8[%c0_13, %c0_14] : memref<8x128xf32, #tpu.memory_space<vmem>>, vector<8x128xf32>
    %c0_15 = arith.constant 0 : index
    %c0_16 = arith.constant 0 : index
    %30 = vector.load %arg5[%c0_15, %c0_16] : memref<128x128xf32, #tpu.memory_space<vmem>>, vector<128x128xf32>
    %cst_17 = arith.constant dense<0.000000e+00> : vector<8x128xf32>
    %31 = tpu.matmul %28, %30, %cst_17 {dimension_numbers = #tpu.dot_dimension_numbers<[1], [0], [0], [1], [0, 0, 1, 1], [], []>} : vector<8x128xf32>, vector<128x128xf32>, vector<8x128xf32> -> vector<8x128xf32>
    %32 = arith.addf %29, %31 : vector<8x128xf32>
    %c0_18 = arith.constant 0 : index
    %c0_19 = arith.constant 0 : index
    %33 = vector.load %arg8[%c0_18, %c0_19] : memref<8x128xf32, #tpu.memory_space<vmem>>, vector<8x128xf32>
    tpu.vector_store %arg8[%c0_18, %c0_19], %32 {strides = array<i32>} : memref<8x128xf32, #tpu.memory_space<vmem>>, vector<8x128xf32>,
    %c0_i32_20 = arith.constant 0 : i32
    %34 = arith.cmpi eq, %arg0, %c0_i32_20 : i32
    %35 = arith.extui %34 : i1 to i32
    %c0_i32_21 = arith.constant 0 : i32
    %36 = arith.cmpi ne, %35, %c0_i32_21 : i32
    scf.if %36 {
      %c0_22 = arith.constant 0 : index
      %c0_23 = arith.constant 0 : index
      %37 = vector.load %arg8[%c0_22, %c0_23] : memref<8x128xf32, #tpu.memory_space<vmem>>, vector<8x128xf32>
      %c0_24 = arith.constant 0 : index
      %c0_25 = arith.constant 0 : index
      %38 = vector.load %arg6[%c0_24, %c0_25] : memref<1x128xf32, #tpu.memory_space<vmem>>, vector<1x128xf32>
      %39 = vector.broadcast %38 : vector<1x128xf32> to vector<8x128xf32>
      %40 = arith.addf %37, %39 : vector<8x128xf32>
      %c0_26 = arith.constant 0 : index
      %c0_27 = arith.constant 0 : index
      %41 = vector.load %arg7[%c0_26, %c0_27] : memref<8x128xf32, #tpu.memory_space<vmem>>, vector<8x128xf32>
      tpu.vector_store %arg7[%c0_26, %c0_27], %40 {strides = array<i32>} : memref<8x128xf32, #tpu.memory_space<vmem>>, vector<8x128xf32>,
    } else {
    }
    return
  }
  func.func @transform_0(%arg0: i32) -> (i32, i32) {
    %c0_i32 = arith.constant 0 : i32
    %c0_i32_0 = arith.constant 0 : i32
    %c0_i32_1 = arith.constant 0 : i32
    return %c0_i32, %c0_i32_0 : i32, i32
  }
  func.func @transform_1(%arg0: i32) -> (i32, i32) {
    %c0_i32 = arith.constant 0 : i32
    %c0_i32_0 = arith.constant 0 : i32
    return %c0_i32, %arg0 : i32, i32
  }
  func.func @transform_2(%arg0: i32) -> (i32, i32) {
    %c0_i32 = arith.constant 0 : i32
    %c0_i32_0 = arith.constant 0 : i32
    return %c0_i32, %arg0 : i32, i32
  }
  func.func @transform_3(%arg0: i32) -> (i32, i32) {
    %c0_i32 = arith.constant 0 : i32
    %c0_i32_0 = arith.constant 0 : i32
    return %c0_i32, %arg0 : i32, i32
  }
  func.func @transform_4(%arg0: i32) -> (i32, i32) {
    %c0_i32 = arith.constant 0 : i32
    %c0_i32_0 = arith.constant 0 : i32
    return %arg0, %c0_i32 : i32, i32
  }
  func.func @transform_5(%arg0: i32) -> (i32, i32) {
    %c0_i32 = arith.constant 0 : i32
    %c0_i32_0 = arith.constant 0 : i32
    %c0_i32_1 = arith.constant 0 : i32
    return %c0_i32, %c0_i32_0 : i32, i32
  }
  func.func @transform_6(%arg0: i32) -> (i32, i32) {
    %c0_i32 = arith.constant 0 : i32
    %c0_i32_0 = arith.constant 0 : i32
    %c0_i32_1 = arith.constant 0 : i32
    return %c0_i32, %c0_i32_0 : i32, i32
  }
}

</mosaic_0001>

<llo_original>
// kernel: tpu_custom_call.1
$region0: #{tpu_custom_call.1}
  #allocation0 [shape = 'u32[]', space=smem, size = 0x4, offset = 0x4, fixed_abs, tag = 'smem constant byte address 0x4 - core index']
  #allocation1 [shape = 'u32[144,128]{1,0:T(1,128)}', space=vmem, size = 0x12000, scoped, tag = 'internal scratch']
  #allocation2 [shape = 'f32[8,128]{1,0:T(8,128)}', space=vmem, size = 0x1000, scoped, tag = 'scratch operand']
  %s0 = inlined_call_operand.hbm [shape: f32[8,128], index: 0, kind: input, shape index: {}]
  %s1 = inlined_call_operand.hbm [shape: f32[128,128], index: 1, kind: input, shape index: {}]
  %s2 = inlined_call_operand.vmem [shape: f32[1,128], index: 2, kind: input, shape index: {}]
  %s3 = inlined_call_operand.vmem [shape: f32[1,128], index: 3, kind: input, shape index: {}]
  %s4 = inlined_call_operand.hbm [shape: f32[128,128], index: 4, kind: input, shape index: {}]
  %s5 = inlined_call_operand.vmem [shape: f32[1,128], index: 5, kind: input, shape index: {}]
  %s6 = inlined_call_operand.hbm [shape: f32[8,128], index: 6, kind: output, shape index: {}]
  %s7 = sld [smem:[#allocation0]]
  $region54: #{tpu_custom_call.1} parent=0
    _
  %s9 = ssub.s32 1, %s7
  %s10 = scalar_select 0, %s9, %s7
  $region1: #{tpu_custom_call.1} parent=0
    #allocation3 [shape = 'u8[4096]{0}', space=vmem, size = 0x1000, scoped, tag = 'input window, operand 0, single buffered']
    #allocation4 [shape = 's32[1]{0}', space=sflag, size = 0x4, scoped, tag = 'scoped memory for tpu_custom_call.1']
    #allocation5 [shape = 's32[1]{0}', space=sflag, size = 0x4, scoped, tag = 'scoped memory for tpu_custom_call.1']
    #allocation6 [shape = 'u8[65536]{0}', space=vmem, size = 0x10000, scoped, tag = 'input window, operand 1, single buffered']
    #allocation7 [shape = 's32[1]{0}', space=sflag, size = 0x4, scoped, tag = 'scoped memory for tpu_custom_call.1']
    #allocation8 [shape = 'u8[65536]{0}', space=vmem, size = 0x10000, scoped, tag = 'input window, operand 4, single buffered']
    #allocation9 [shape = 'u8[4096]{0}', space=vmem, size = 0x1000, scoped, tag = 'output window, operand 0, single buffered']
    %11 = vsyncpa [#allocation4], 0
    %12 = vsyncpa [#allocation7], 0
    %13 = vsyncpa [#allocation5], 0
    // Predicated region
    $region2: #{tpu_custom_call.1} parent=1 // pred_check
      _
    $region3: #{tpu_custom_call.1} parent=1 // pred_check_branch
      %15 = sbr.rel (0) target = $region5
    $region4: #{tpu_custom_call.1} parent=1 // pred_region
      %s17 = ssub.s32 128, 128
      %18 = vsyncadd [#allocation4], %s17
      %s20 = sshll.u32 [#allocation3], 4
      %s21 = int_to_ptr.vmem [resolvable:$true] %s20
      %23 = dma.hbm_to_vmem [thread:$0]  %s0, 128, %s21, [#allocation4]
    $region5: #{tpu_custom_call.1} parent=1 // pred_fallthru
      _
    // Predicated region
    $region6: #{tpu_custom_call.1} parent=1 // pred_check
      _
    $region7: #{tpu_custom_call.1} parent=1 // pred_check_branch
      %25 = sbr.rel (0) target = $region9
    $region8: #{tpu_custom_call.1} parent=1 // pred_region
      %s27 = ssub.s32 2048, 2048
      %28 = vsyncadd [#allocation7], %s27
      %s29 = sshll.u32 [#allocation6], 4
      %s30 = int_to_ptr.vmem [resolvable:$true] %s29
      %35 = dma.hbm_to_vmem [thread:$0]  %s1, 2048, %s30, [#allocation7], 128, 128, 8
    $region9: #{tpu_custom_call.1} parent=1 // pred_fallthru
      _
    // Predicated region
    $region10: #{tpu_custom_call.1} parent=1 // pred_check
      _
    $region11: #{tpu_custom_call.1} parent=1 // pred_check_branch
      %37 = sbr.rel (0) target = $region13
    $region12: #{tpu_custom_call.1} parent=1 // pred_region
      _
    $region13: #{tpu_custom_call.1} parent=1 // pred_fallthru
      _
    // Predicated region
    $region14: #{tpu_custom_call.1} parent=1 // pred_check
      _
    $region15: #{tpu_custom_call.1} parent=1 // pred_check_branch
      %39 = sbr.rel (0) target = $region17
    $region16: #{tpu_custom_call.1} parent=1 // pred_region
      _
    $region17: #{tpu_custom_call.1} parent=1 // pred_fallthru
      _
    // Predicated region
    $region18: #{tpu_custom_call.1} parent=1 // pred_check
      _
    $region19: #{tpu_custom_call.1} parent=1 // pred_check_branch
      %41 = sbr.rel (0) target = $region21
    $region20: #{tpu_custom_call.1} parent=1 // pred_region
      %s43 = ssub.s32 2048, 2048
      %44 = vsyncadd [#allocation7], %s43
      %s45 = sshll.u32 [#allocation8], 4
      %s46 = int_to_ptr.vmem [resolvable:$true] %s45
      %51 = dma.hbm_to_vmem [thread:$0]  %s4, 2048, %s46, [#allocation7], 128, 128, 8
    $region21: #{tpu_custom_call.1} parent=1 // pred_fallthru
      _
    // Predicated region
    $region22: #{tpu_custom_call.1} parent=1 // pred_check
      _
    $region23: #{tpu_custom_call.1} parent=1 // pred_check_branch
      %53 = sbr.rel (0) target = $region25
    $region24: #{tpu_custom_call.1} parent=1 // pred_region
      _
    $region25: #{tpu_custom_call.1} parent=1 // pred_fallthru
      _
    // Predicated region
    $region26: #{tpu_custom_call.1} parent=1 // pred_check
      _
    $region27: #{tpu_custom_call.1} parent=1 // pred_check_branch
      %55 = sbr.rel (0) target = $region29
    $region28: #{tpu_custom_call.1} parent=1 // pred_region
      %56 = dma.done [#allocation4], 128
    $region29: #{tpu_custom_call.1} parent=1 // pred_fallthru
      _
    // Predicated region
    $region30: #{tpu_custom_call.1} parent=1 // pred_check
      _
    $region31: #{tpu_custom_call.1} parent=1 // pred_check_branch
      %58 = sbr.rel (0) target = $region33
    $region32: #{tpu_custom_call.1} parent=1 // pred_region
      %59 = dma.done [#allocation7], 2048
    $region33: #{tpu_custom_call.1} parent=1 // pred_fallthru
      _
    // Predicated region
    $region34: #{tpu_custom_call.1} parent=1 // pred_check
      _
    $region35: #{tpu_custom_call.1} parent=1 // pred_check_branch
      %61 = sbr.rel (0) target = $region37
    $region36: #{tpu_custom_call.1} parent=1 // pred_region
      %62 = dma.done [#allocation7], 2048
    $region37: #{tpu_custom_call.1} parent=1 // pred_fallthru
      _
    %p63 = scmp.eq.s32.totalorder 0, 0
    // Predicated region
    $region38: #{tpu_custom_call.1} parent=1 // pred_check
      %p64 = pneg %p63
    $region39: #{tpu_custom_call.1} parent=1 // pred_check_branch
      %66 = sbr.rel (%p64) target = $region41
    $region40: #{tpu_custom_call.1} parent=1 // pred_region
      %67 = vst [vmem:[#allocation2] sm:$0xff] 0.0
    $region41: #{tpu_custom_call.1} parent=1 // pred_fallthru
      _
    %v68 = vld [vmem:[#allocation3] sm:$0xff]
    %v69 = vld [vmem:[#allocation6] sm:$0xff]
    %v70 = vld [vmem:[#allocation6 + $0x8] sm:$0xff]
    %v71 = vld [vmem:[#allocation6 + $0x10] sm:$0xff]
    %v72 = vld [vmem:[#allocation6 + $0x18] sm:$0xff]
    %v73 = vld [vmem:[#allocation6 + $0x20] sm:$0xff]
    %v74 = vld [vmem:[#allocation6 + $0x28] sm:$0xff]
    %v75 = vld [vmem:[#allocation6 + $0x30] sm:$0xff]
    %v76 = vld [vmem:[#allocation6 + $0x38] sm:$0xff]
    %v77 = vld [vmem:[#allocation6 + $0x40] sm:$0xff]
    %v78 = vld [vmem:[#allocation6 + $0x48] sm:$0xff]
    %v79 = vld [vmem:[#allocation6 + $0x50] sm:$0xff]
    %v80 = vld [vmem:[#allocation6 + $0x58] sm:$0xff]
    %v81 = vld [vmem:[#allocation6 + $0x60] sm:$0xff]
    %v82 = vld [vmem:[#allocation6 + $0x68] sm:$0xff]
    %v83 = vld [vmem:[#allocation6 + $0x70] sm:$0xff]
    %v84 = vld [vmem:[#allocation6 + $0x78] sm:$0xff]
    %85 = vmatprep.subr.mxu0 0.0
    %86 = vmatpush1.msra.mxu0 %v84
    %87 = vmatprep.subr.mxu0 0.0
    %88 = vmatpush1.msra.mxu0 %v83
    %89 = vmatprep.subr.mxu0 0.0
    %90 = vmatpush1.msra.mxu0 %v82
    %91 = vmatprep.subr.mxu0 0.0
    %92 = vmatpush1.msra.mxu0 %v81
    %93 = vmatprep.subr.mxu0 0.0
    %94 = vmatpush1.msra.mxu0 %v80
    %95 = vmatprep.subr.mxu0 0.0
    %96 = vmatpush1.msra.mxu0 %v79
    %97 = vmatprep.subr.mxu0 0.0
    %98 = vmatpush1.msra.mxu0 %v78
    %99 = vmatprep.subr.mxu0 0.0
    %100 = vmatpush1.msra.mxu0 %v77
    %101 = vmatprep.subr.mxu0 0.0
    %102 = vmatpush1.msra.mxu0 %v76
    %103 = vmatprep.subr.mxu0 0.0
    %104 = vmatpush1.msra.mxu0 %v75
    %105 = vmatprep.subr.mxu0 0.0
    %106 = vmatpush1.msra.mxu0 %v74
    %107 = vmatprep.subr.mxu0 0.0
    %108 = vmatpush1.msra.mxu0 %v73
    %109 = vmatprep.subr.mxu0 0.0
    %110 = vmatpush1.msra.mxu0 %v72
    %111 = vmatprep.subr.mxu0 0.0
    %112 = vmatpush1.msra.mxu0 %v71
    %113 = vmatprep.subr.mxu0 0.0
    %114 = vmatpush1.msra.mxu0 %v70
    %115 = vmatprep.subr.mxu0 0.0
    %116 = vmatpush1.msra.mxu0 %v69
    %117 = vmatprep.subr.mxu0 0.0
    %118 = vmatpush2.msra.mxu0 0.0
    %119 = vmatprep.subr.mxu0 0.0
    %120 = vmatpush2.msra.mxu0 0.0
    %121 = vmatprep.subr.mxu0 0.0
    %122 = vmatpush2.msra.mxu0 0.0
    %123 = vmatprep.subr.mxu0 0.0
    %124 = vmatpush2.msra.mxu0 0.0
    %125 = vmatprep.subr.mxu0 0.0
    %126 = vmatpush2.msra.mxu0 0.0
    %127 = vmatprep.subr.mxu0 0.0
    %128 = vmatpush2.msra.mxu0 0.0
    %129 = vmatprep.subr.mxu0 0.0
    %130 = vmatpush2.msra.mxu0 0.0
    %131 = vmatprep.subr.mxu0 0.0
    %132 = vmatpush2.msra.mxu0 0.0
    %133 = vmatprep.subr.mxu0 0.0
    %134 = vmatpush2.msra.mxu0 0.0
    %135 = vmatprep.subr.mxu0 0.0
    %136 = vmatpush2.msra.mxu0 0.0
    %137 = vmatprep.subr.mxu0 0.0
    %138 = vmatpush2.msra.mxu0 0.0
    %139 = vmatprep.subr.mxu0 0.0
    %140 = vmatpush2.msra.mxu0 0.0
    %141 = vmatprep.subr.mxu0 0.0
    %142 = vmatpush2.msra.mxu0 0.0
    %143 = vmatprep.subr.mxu0 0.0
    %144 = vmatpush2.msra.mxu0 0.0
    %145 = vmatprep.subr.mxu0 0.0
    %146 = vmatpush2.msra.mxu0 0.0
    %147 = vmatprep.subr.mxu0 0.0
    %148 = vmatpush2.msra.mxu0 0.0
    %149 = vmatprep.mubr.f32.mxu0 0.0
    %150 = vmatmul.mubr.f32.gmra.mxu0 %v68
    %v151 = vpop.f32.mrf.mxu0
    %v152 = vadd.f32 0.0, %v151
    %v153 = vpop.f32.mrf.mxu0
    %154 = vdwg.mxu0
    %v155 = vrot.slane %v152, 4
    %v156 = vadd.f32 %v152, %v155
    %v157 = vrot.slane %v156, 2
    %v158 = vadd.f32 %v156, %v157
    %v159 = vrot.slane %v158, 1
    %v160 = vadd.f32 %v158, %v159
    %v161 = vmul.f32 %v160, 0.125
    %v162 = vsub.f32 %v152, %v161
    %v163 = vmul.f32 %v162, %v162
    %v164 = vrot.slane %v163, 4
    %v165 = vadd.f32 %v163, %v164
    %v166 = vrot.slane %v165, 2
    %v167 = vadd.f32 %v165, %v166
    %v168 = vrot.slane %v167, 1
    %v169 = vadd.f32 %v167, %v168
    %v170 = vmul.f32 %v169, 0.125
    %v171 = vld [vmem:[%s2] sm:$0x1]
    %v172 = vadd.f32 %v170, 1e-05
    %v173 = vrsqrt.pop %v172
    %v174 = vmul.f32 %v171, %v173
    %v175 = vld [vmem:[%s3] sm:$0x1]
    %v176 = vmul.f32 %v161, %v174
    %v177 = vsub.f32 %v175, %v176
    %v179 = vlaneseq
    %v180 = vshrl.u32 %v179, 7
    %v181 = vsub.s32 0, %v180
    %v182 = vrot.slane %v174, %v181
    %v184 = vmul.f32 %v152, %v182
    %v186 = vlaneseq
    %v187 = vshrl.u32 %v186, 7
    %v188 = vsub.s32 0, %v187
    %v189 = vrot.slane %v177, %v188
    %v191 = vadd.f32 %v184, %v189
    %v192 = vld [vmem:[#allocation2] sm:$0xff]
    %v193 = vld [vmem:[#allocation8] sm:$0xff]
    %v194 = vld [vmem:[#allocation8 + $0x8] sm:$0xff]
    %v195 = vld [vmem:[#allocation8 + $0x10] sm:$0xff]
    %v196 = vld [vmem:[#allocation8 + $0x18] sm:$0xff]
    %v197 = vld [vmem:[#allocation8 + $0x20] sm:$0xff]
    %v198 = vld [vmem:[#allocation8 + $0x28] sm:$0xff]
    %v199 = vld [vmem:[#allocation8 + $0x30] sm:$0xff]
    %v200 = vld [vmem:[#allocation8 + $0x38] sm:$0xff]
    %v201 = vld [vmem:[#allocation8 + $0x40] sm:$0xff]
    %v202 = vld [vmem:[#allocation8 + $0x48] sm:$0xff]
    %v203 = vld [vmem:[#allocation8 + $0x50] sm:$0xff]
    %v204 = vld [vmem:[#allocation8 + $0x58] sm:$0xff]
    %v205 = vld [vmem:[#allocation8 + $0x60] sm:$0xff]
    %v206 = vld [vmem:[#allocation8 + $0x68] sm:$0xff]
    %v207 = vld [vmem:[#allocation8 + $0x70] sm:$0xff]
    %v208 = vld [vmem:[#allocation8 + $0x78] sm:$0xff]
    %209 = vmatprep.subr.mxu0 0.0
    %210 = vmatpush1.msra.mxu0 %v208
    %211 = vmatprep.subr.mxu0 0.0
    %212 = vmatpush1.msra.mxu0 %v207
    %213 = vmatprep.subr.mxu0 0.0
    %214 = vmatpush1.msra.mxu0 %v206
    %215 = vmatprep.subr.mxu0 0.0
    %216 = vmatpush1.msra.mxu0 %v205
    %217 = vmatprep.subr.mxu0 0.0
    %218 = vmatpush1.msra.mxu0 %v204
    %219 = vmatprep.subr.mxu0 0.0
    %220 = vmatpush1.msra.mxu0 %v203
    %221 = vmatprep.subr.mxu0 0.0
    %222 = vmatpush1.msra.mxu0 %v202
    %223 = vmatprep.subr.mxu0 0.0
    %224 = vmatpush1.msra.mxu0 %v201
    %225 = vmatprep.subr.mxu0 0.0
    %226 = vmatpush1.msra.mxu0 %v200
    %227 = vmatprep.subr.mxu0 0.0
    %228 = vmatpush1.msra.mxu0 %v199
    %229 = vmatprep.subr.mxu0 0.0
    %230 = vmatpush1.msra.mxu0 %v198
    %231 = vmatprep.subr.mxu0 0.0
    %232 = vmatpush1.msra.mxu0 %v197
    %233 = vmatprep.subr.mxu0 0.0
    %234 = vmatpush1.msra.mxu0 %v196
    %235 = vmatprep.subr.mxu0 0.0
    %236 = vmatpush1.msra.mxu0 %v195
    %237 = vmatprep.subr.mxu0 0.0
    %238 = vmatpush1.msra.mxu0 %v194
    %239 = vmatprep.subr.mxu0 0.0
    %240 = vmatpush1.msra.mxu0 %v193
    %241 = vmatprep.subr.mxu0 0.0
    %242 = vmatpush2.msra.mxu0 0.0
    %243 = vmatprep.subr.mxu0 0.0
    %244 = vmatpush2.msra.mxu0 0.0
    %245 = vmatprep.subr.mxu0 0.0
    %246 = vmatpush2.msra.mxu0 0.0
    %247 = vmatprep.subr.mxu0 0.0
    %248 = vmatpush2.msra.mxu0 0.0
    %249 = vmatprep.subr.mxu0 0.0
    %250 = vmatpush2.msra.mxu0 0.0
    %251 = vmatprep.subr.mxu0 0.0
    %252 = vmatpush2.msra.mxu0 0.0
    %253 = vmatprep.subr.mxu0 0.0
    %254 = vmatpush2.msra.mxu0 0.0
    %255 = vmatprep.subr.mxu0 0.0
    %256 = vmatpush2.msra.mxu0 0.0
    %257 = vmatprep.subr.mxu0 0.0
    %258 = vmatpush2.msra.mxu0 0.0
    %259 = vmatprep.subr.mxu0 0.0
    %260 = vmatpush2.msra.mxu0 0.0
    %261 = vmatprep.subr.mxu0 0.0
    %262 = vmatpush2.msra.mxu0 0.0
    %263 = vmatprep.subr.mxu0 0.0
    %264 = vmatpush2.msra.mxu0 0.0
    %265 = vmatprep.subr.mxu0 0.0
    %266 = vmatpush2.msra.mxu0 0.0
    %267 = vmatprep.subr.mxu0 0.0
    %268 = vmatpush2.msra.mxu0 0.0
    %269 = vmatprep.subr.mxu0 0.0
    %270 = vmatpush2.msra.mxu0 0.0
    %271 = vmatprep.subr.mxu0 0.0
    %272 = vmatpush2.msra.mxu0 0.0
    %273 = vmatprep.mubr.f32.mxu0 0.0
    %274 = vmatmul.mubr.f32.gmra.mxu0 %v191
    %v275 = vpop.f32.mrf.mxu0
    %v276 = vadd.f32 0.0, %v275
    %v277 = vpop.f32.mrf.mxu0
    %278 = vdwg.mxu0
    %v279 = vadd.f32 %v192, %v276
    %280 = vst [vmem:[#allocation2] sm:$0xff] %v279
    // Predicated region
    $region42: #{tpu_custom_call.1} parent=1 // pred_check
      %p281 = pneg %p63
    $region43: #{tpu_custom_call.1} parent=1 // pred_check_branch
      %283 = sbr.rel (%p281) target = $region45
    $region44: #{tpu_custom_call.1} parent=1 // pred_region
      %v284 = vld [vmem:[#allocation2] sm:$0xff]
      %v285 = vld [vmem:[%s5] sm:$0x1]
      %v287 = vlaneseq
      %v288 = vshrl.u32 %v287, 7
      %v289 = vsub.s32 0, %v288
      %v290 = vrot.slane %v285, %v289
      %v292 = vadd.f32 %v284, %v290
      %293 = vst [vmem:[#allocation9] sm:$0xff] %v292
    $region45: #{tpu_custom_call.1} parent=1 // pred_fallthru
      _
    // Predicated region
    $region46: #{tpu_custom_call.1} parent=1 // pred_check
      _
    $region47: #{tpu_custom_call.1} parent=1 // pred_check_branch
      %295 = sbr.rel (0) target = $region49
    $region48: #{tpu_custom_call.1} parent=1 // pred_region
      %s297 = ssub.s32 128, 128
      %298 = vsyncadd [#allocation5], %s297
      %s300 = sshll.u32 [#allocation9], 4
      %s301 = int_to_ptr.vmem [resolvable:$true] %s300
      %303 = dma.vmem_to_hbm [thread:$0]  %s301, 128, %s6, [#allocation5]
    $region49: #{tpu_custom_call.1} parent=1 // pred_fallthru
      _
    // Predicated region
    $region50: #{tpu_custom_call.1} parent=1 // pred_check
      _
    $region51: #{tpu_custom_call.1} parent=1 // pred_check_branch
      %305 = sbr.rel (0) target = $region53
    $region52: #{tpu_custom_call.1} parent=1 // pred_region
      %306 = dma.done [#allocation5], 128
    $region53: #{tpu_custom_call.1} parent=1 // pred_fallthru
      _
    %307 = vsyncpa [#allocation4], 1
    %308 = vsyncpa [#allocation7], 1
    %309 = vsyncpa [#allocation5], 1

</llo_original>
